<compile_context>
chip_gen: v7x
topology: tpu7x:2x2x1
jax: 0.10.0
libtpu: 0.0.40
codegen_flags: <defaults>
</compile_context>

<pallas_src>
import jax
import jax.numpy as jnp
from jax.experimental import pallas as pl
from jax.experimental.pallas import tpu as pltpu


def actor_kernel(x_ref, w1_ref, w2_ref, w3_ref, w4_ref, b_ref, y_ref):
    """MLP hot path: (Lin+ReLU) x3 -> Lin, single lane-dense output slab."""
    h1 = w1_ref.shape[1]
    h2 = w2_ref.shape[1]
    h3 = w3_ref.shape[1]
    d_out = w4_ref.shape[1]

    x = x_ref[...]

    h = jnp.dot(x, w1_ref[...], preferred_element_type=jnp.float32)
    h = jnp.maximum(h + b_ref[0:1, :h1], 0.0)

    h = jnp.dot(h, w2_ref[...], preferred_element_type=jnp.float32)
    h = jnp.maximum(h + b_ref[1:2, :h2], 0.0)

    h = jnp.dot(h, w3_ref[...], preferred_element_type=jnp.float32)
    h = jnp.maximum(h + b_ref[2:3, :h3], 0.0)

    y = jnp.dot(h, w4_ref[...], preferred_element_type=jnp.float32)
    y_ref[...] = y + b_ref[3:4, :d_out]


def actor_forward(state, params, act_size, tile_b=128):
    """Returns (mean, log_std) = Actor.forward(state)."""
    w1, b1, w2, b2, w3, b3, w4, b4 = params
    B, d_in = state.shape
    hidden = w1.shape[1]
    d_out = w4.shape[1]          # = 2 * act_size

    # --- pack the four biases into one (4, W) buffer (single DMA) ---------
    W = max(hidden, d_out)
    def _row(b):
        b = b.reshape(1, -1)
        return jnp.pad(b, ((0, 0), (0, W - b.shape[1])))
    b_pack = jnp.concatenate([_row(b1), _row(b2), _row(b3), _row(b4)], axis=0)

    # --- batch tiling: TILE_B multiple of 8, pad batch up to a full grid ---
    tb = min(tile_b, max(8, ((B + 7) // 8) * 8))
    tb = ((tb + 7) // 8) * 8
    n_blocks = pl.cdiv(B, tb)
    B_pad = n_blocks * tb
    x = state if B_pad == B else jnp.pad(state, ((0, B_pad - B), (0, 0)))

    const = lambda i: (0, 0)     # weights/biases: same block every grid step

    flops = 2 * B_pad * (d_in * hidden + 2 * hidden * hidden + hidden * d_out)
    bytes_accessed = 4 * (x.size + w1.size + w2.size + w3.size + w4.size
                          + b_pack.size + B_pad * d_out)

    y = pl.pallas_call(
        actor_kernel,
        out_shape=jax.ShapeDtypeStruct((B_pad, d_out), jnp.float32),
        grid=(n_blocks,),
        in_specs=[
            pl.BlockSpec((tb, d_in), lambda i: (i, 0)),     # state: tiled over batch
            pl.BlockSpec((d_in, hidden), const),            # w1 (resident)
            pl.BlockSpec((hidden, hidden), const),          # w2 (resident)
            pl.BlockSpec((hidden, hidden), const),          # w3 (resident)
            pl.BlockSpec((hidden, d_out), const),           # w4 (resident)
            pl.BlockSpec((4, W), const),                    # packed biases (resident)
        ],
        out_specs=pl.BlockSpec((tb, d_out), lambda i: (i, 0)),
        compiler_params=pltpu.CompilerParams(
            dimension_semantics=("parallel",)),
        cost_estimate=pl.CostEstimate(
            flops=flops, transcendentals=0, bytes_accessed=bytes_accessed),
    )(x, w1, w2, w3, w4, b_pack)

    # split + clamp in the wrapper (fused by XLA, keeps kernel output lane-dense)
    y = y[:B]
    mean = y[:, :act_size]
    log_std = jnp.clip(y[:, act_size:], -1.0, 1.0)
    return mean, log_std


def init_actor_params(key, linear_output, act_size, hidden_size, init_w=0.003):
    """Synthetic init mirroring the PyTorch module's shapes.

    First three Linear layers: PyTorch default uniform(-1/sqrt(fan_in), +).
    Last layer: uniform(-init_w, init_w). Weights already transposed to [in, out].
    """
    in_size = linear_output + 2
    out_size = act_size * 2
    dims = [(in_size, hidden_size),
            (hidden_size, hidden_size),
            (hidden_size, hidden_size),
            (hidden_size, out_size)]
    params = []
    keys = jax.random.split(key, 2 * len(dims))
    for i, (fan_in, fan_out) in enumerate(dims):
        bound = init_w if i == len(dims) - 1 else 1.0 / jnp.sqrt(fan_in)
        w = jax.random.uniform(keys[2 * i], (fan_in, fan_out),
                               minval=-bound, maxval=bound, dtype=jnp.float32)
        b = jax.random.uniform(keys[2 * i + 1], (1, fan_out),
                               minval=-bound, maxval=bound, dtype=jnp.float32)
        params.append(w)
        params.append(b)
    return tuple(params)


def reference_forward(state, params, act_size):
    """Pure-JAX reference of Actor.forward."""
    w1, b1, w2, b2, w3, b3, w4, b4 = params
    h = jnp.maximum(state @ w1 + b1, 0.0)
    h = jnp.maximum(h @ w2 + b2, 0.0)
    h = jnp.maximum(h @ w3 + b3, 0.0)
    y = h @ w4 + b4
    return y[:, :act_size], jnp.clip(y[:, act_size:], -1.0, 1.0)


if __name__ == "__main__":
    # Shapes consistent with the module; batch chosen to exercise the grid
    # (2 blocks of 128) and the batch-padding path.
    linear_output = 30          # MLP input = linear_output + 2 = 32
    act_size = 4                # MLP output = act_size * 2 = 8
    hidden_size = 32
    batch = 200                 # -> padded to 256, grid=(2,), TILE_B=128

    key = jax.random.PRNGKey(0)
    k_params, k_state = jax.random.split(key)

    params = init_actor_params(k_params, linear_output, act_size, hidden_size)
    state = jax.random.normal(k_state, (batch, linear_output + 2),
                              dtype=jnp.float32)

    mean, log_std = actor_forward(state, params, act_size)
    mean = jax.block_until_ready(mean)
    log_std = jax.block_until_ready(log_std)

    ref_mean, ref_log_std = reference_forward(state, params, act_size)
    assert mean.shape == (batch, act_size)
    assert log_std.shape == (batch, act_size)
    assert jnp.allclose(mean, ref_mean, atol=1e-5, rtol=1e-5)
    assert jnp.allclose(log_std, ref_log_std, atol=1e-5, rtol=1e-5)
    assert float(jnp.max(log_std)) <= 1.0 and float(jnp.min(log_std)) >= -1.0

    # Also check the small-batch (no-grid-tiling-needed) path.
    mean_s, log_std_s = actor_forward(state[:8], params, act_size)
    mean_s = jax.block_until_ready(mean_s)
    assert jnp.allclose(mean_s, ref_mean[:8], atol=1e-5, rtol=1e-5)
    assert jnp.allclose(log_std_s, ref_log_std[:8], atol=1e-5, rtol=1e-5)

    print("KERNEL_OK")
</pallas_src>

<mosaic_0001>
module attributes {stable_mosaic.version = 11 : i64} {
  func.func @actor_kernel(%arg0: i32, %arg1: memref<128x32xf32, #tpu.memory_space<vmem>>, %arg2: memref<32x32xf32, #tpu.memory_space<vmem>>, %arg3: memref<32x32xf32, #tpu.memory_space<vmem>>, %arg4: memref<32x32xf32, #tpu.memory_space<vmem>>, %arg5: memref<32x8xf32, #tpu.memory_space<vmem>>, %arg6: memref<4x32xf32, #tpu.memory_space<vmem>>, %arg7: memref<128x8xf32, #tpu.memory_space<vmem>>) attributes {dimension_semantics = [#tpu.dimension_semantics<parallel>], iteration_bounds = array<i64: 2>, scalar_prefetch = 0 : i64, scratch_operands = 0 : i64, tpu.core_type = #tpu.core_type<tc>, window_params = [{transform_indices = @transform_0, window_bounds = array<i64: 128, 32>}, {pipeline_mode = #tpu.pipeline_mode<synchronous>, transform_indices = @transform_1, window_bounds = array<i64: 32, 32>}, {pipeline_mode = #tpu.pipeline_mode<synchronous>, transform_indices = @transform_2, window_bounds = array<i64: 32, 32>}, {pipeline_mode = #tpu.pipeline_mode<synchronous>, transform_indices = @transform_3, window_bounds = array<i64: 32, 32>}, {pipeline_mode = #tpu.pipeline_mode<synchronous>, transform_indices = @transform_4, window_bounds = array<i64: 32, 8>}, {pipeline_mode = #tpu.pipeline_mode<synchronous>, transform_indices = @transform_5, window_bounds = array<i64: 4, 32>}, {transform_indices = @transform_6, window_bounds = array<i64: 128, 8>}]} {
    %c0 = arith.constant 0 : index
    %c0_0 = arith.constant 0 : index
    %0 = vector.load %arg1[%c0, %c0_0] : memref<128x32xf32, #tpu.memory_space<vmem>>, vector<128x32xf32>
    %c0_1 = arith.constant 0 : index
    %c0_2 = arith.constant 0 : index
    %1 = vector.load %arg2[%c0_1, %c0_2] : memref<32x32xf32, #tpu.memory_space<vmem>>, vector<32x32xf32>
    %cst = arith.constant dense<0.000000e+00> : vector<128x32xf32>
    %2 = tpu.matmul %0, %1, %cst {dimension_numbers = #tpu.dot_dimension_numbers<[1], [0], [0], [1], [0, 0, 1, 1], [], []>} : vector<128x32xf32>, vector<32x32xf32>, vector<128x32xf32> -> vector<128x32xf32>
    %c0_3 = arith.constant 0 : index
    %c0_4 = arith.constant 0 : index
    %3 = vector.load %arg6[%c0_3, %c0_4] : memref<4x32xf32, #tpu.memory_space<vmem>>, vector<1x32xf32>
    %4 = vector.broadcast %3 : vector<1x32xf32> to vector<128x32xf32>
    %5 = arith.addf %2, %4 : vector<128x32xf32>
    %cst_5 = arith.constant 0.000000e+00 : f32
    %6 = vector.broadcast %cst_5 : f32 to vector<128x32xf32>
    %7 = arith.maximumf %5, %6 : vector<128x32xf32>
    %c0_6 = arith.constant 0 : index
    %c0_7 = arith.constant 0 : index
    %8 = vector.load %arg3[%c0_6, %c0_7] : memref<32x32xf32, #tpu.memory_space<vmem>>, vector<32x32xf32>
    %cst_8 = arith.constant dense<0.000000e+00> : vector<128x32xf32>
    %9 = tpu.matmul %7, %8, %cst_8 {dimension_numbers = #tpu.dot_dimension_numbers<[1], [0], [0], [1], [0, 0, 1, 1], [], []>} : vector<128x32xf32>, vector<32x32xf32>, vector<128x32xf32> -> vector<128x32xf32>
    %c1 = arith.constant 1 : index
    %c0_9 = arith.constant 0 : index
    %10 = vector.load %arg6[%c1, %c0_9] : memref<4x32xf32, #tpu.memory_space<vmem>>, vector<1x32xf32>
    %11 = vector.broadcast %10 : vector<1x32xf32> to vector<128x32xf32>
    %12 = arith.addf %9, %11 : vector<128x32xf32>
    %cst_10 = arith.constant 0.000000e+00 : f32
    %13 = vector.broadcast %cst_10 : f32 to vector<128x32xf32>
    %14 = arith.maximumf %12, %13 : vector<128x32xf32>
    %c0_11 = arith.constant 0 : index
    %c0_12 = arith.constant 0 : index
    %15 = vector.load %arg4[%c0_11, %c0_12] : memref<32x32xf32, #tpu.memory_space<vmem>>, vector<32x32xf32>
    %cst_13 = arith.constant dense<0.000000e+00> : vector<128x32xf32>
    %16 = tpu.matmul %14, %15, %cst_13 {dimension_numbers = #tpu.dot_dimension_numbers<[1], [0], [0], [1], [0, 0, 1, 1], [], []>} : vector<128x32xf32>, vector<32x32xf32>, vector<128x32xf32> -> vector<128x32xf32>
    %c2 = arith.constant 2 : index
    %c0_14 = arith.constant 0 : index
    %17 = vector.load %arg6[%c2, %c0_14] : memref<4x32xf32, #tpu.memory_space<vmem>>, vector<1x32xf32>
    %18 = vector.broadcast %17 : vector<1x32xf32> to vector<128x32xf32>
    %19 = arith.addf %16, %18 : vector<128x32xf32>
    %cst_15 = arith.constant 0.000000e+00 : f32
    %20 = vector.broadcast %cst_15 : f32 to vector<128x32xf32>
    %21 = arith.maximumf %19, %20 : vector<128x32xf32>
    %c0_16 = arith.constant 0 : index
    %c0_17 = arith.constant 0 : index
    %22 = vector.load %arg5[%c0_16, %c0_17] : memref<32x8xf32, #tpu.memory_space<vmem>>, vector<32x8xf32>
    %cst_18 = arith.constant dense<0.000000e+00> : vector<128x8xf32>
    %23 = tpu.matmul %21, %22, %cst_18 {dimension_numbers = #tpu.dot_dimension_numbers<[1], [0], [0], [1], [0, 0, 1, 1], [], []>} : vector<128x32xf32>, vector<32x8xf32>, vector<128x8xf32> -> vector<128x8xf32>
    %c3 = arith.constant 3 : index
    %c0_19 = arith.constant 0 : index
    %24 = vector.load %arg6[%c3, %c0_19] : memref<4x32xf32, #tpu.memory_space<vmem>>, vector<1x8xf32>
    %25 = vector.broadcast %24 : vector<1x8xf32> to vector<128x8xf32>
    %26 = arith.addf %23, %25 : vector<128x8xf32>
    %c0_20 = arith.constant 0 : index
    %c0_21 = arith.constant 0 : index
    %27 = vector.load %arg7[%c0_20, %c0_21] : memref<128x8xf32, #tpu.memory_space<vmem>>, vector<128x8xf32>
    tpu.vector_store %arg7[%c0_20, %c0_21], %26 {strides = array<i32>} : memref<128x8xf32, #tpu.memory_space<vmem>>, vector<128x8xf32>,
    return
  }
  func.func @transform_0(%arg0: i32) -> (i32, i32) {
    %c0_i32 = arith.constant 0 : i32
    %c0_i32_0 = arith.constant 0 : i32
    return %arg0, %c0_i32 : i32, i32
  }
  func.func @transform_1(%arg0: i32) -> (i32, i32) {
    %c0_i32 = arith.constant 0 : i32
    %c0_i32_0 = arith.constant 0 : i32
    %c0_i32_1 = arith.constant 0 : i32
    return %c0_i32, %c0_i32_0 : i32, i32
  }
  func.func @transform_2(%arg0: i32) -> (i32, i32) {
    %c0_i32 = arith.constant 0 : i32
    %c0_i32_0 = arith.constant 0 : i32
    %c0_i32_1 = arith.constant 0 : i32
    return %c0_i32, %c0_i32_0 : i32, i32
  }
  func.func @transform_3(%arg0: i32) -> (i32, i32) {
    %c0_i32 = arith.constant 0 : i32
    %c0_i32_0 = arith.constant 0 : i32
    %c0_i32_1 = arith.constant 0 : i32
    return %c0_i32, %c0_i32_0 : i32, i32
  }
  func.func @transform_4(%arg0: i32) -> (i32, i32) {
    %c0_i32 = arith.constant 0 : i32
    %c0_i32_0 = arith.constant 0 : i32
    %c0_i32_1 = arith.constant 0 : i32
    return %c0_i32, %c0_i32_0 : i32, i32
  }
  func.func @transform_5(%arg0: i32) -> (i32, i32) {
    %c0_i32 = arith.constant 0 : i32
    %c0_i32_0 = arith.constant 0 : i32
    %c0_i32_1 = arith.constant 0 : i32
    return %c0_i32, %c0_i32_0 : i32, i32
  }
  func.func @transform_6(%arg0: i32) -> (i32, i32) {
    %c0_i32 = arith.constant 0 : i32
    %c0_i32_0 = arith.constant 0 : i32
    return %arg0, %c0_i32 : i32, i32
  }
}

</mosaic_0001>

<llo_original>
// kernel: tpu_custom_call.1
$region0: #{tpu_custom_call.1}
  #allocation0 [shape = 'u32[]', space=smem, size = 0x4, offset = 0x4, fixed_abs, tag = 'smem constant byte address 0x4 - core index']
  #allocation1 [shape = 'u32[144,128]{1,0:T(1,128)}', space=vmem, size = 0x12000, scoped, tag = 'internal scratch']
  %s0 = inlined_call_operand.vmem [shape: f32[256,32], index: 0, kind: input, shape index: {}]
  %s1 = inlined_call_operand.vmem [shape: f32[32,32], index: 1, kind: input, shape index: {}]
  %s2 = inlined_call_operand.vmem [shape: f32[32,32], index: 2, kind: input, shape index: {}]
  %s3 = inlined_call_operand.vmem [shape: f32[32,32], index: 3, kind: input, shape index: {}]
  %s4 = inlined_call_operand.vmem [shape: f32[32,8], index: 4, kind: input, shape index: {}]
  %s5 = inlined_call_operand.vmem [shape: f32[4,32], index: 5, kind: input, shape index: {}]
  %s6 = inlined_call_operand.vmem [shape: f32[256,8], index: 6, kind: output, shape index: {}]
  %s7 = sld [smem:[#allocation0]]
  $region57: #{tpu_custom_call.1} parent=0
    _
  %s9 = ssub.s32 1, %s7
  %s10 = scalar_select 0, %s9, %s7
  loop: start=0, step=1, limit=4
  $region2: #{tpu_custom_call.1} parent=0 // loop_pre_header
    _
  $region3: #{tpu_custom_call.1} parent=0 // loop_header
    %s12 = sphi 0, %s16
    %p13 = scmp.ge.s32.totalorder %s12, 4
    %s22 = sphi 0, %s24
    %s25 = sphi 0, %s22
    %s26 = sphi 0, %s25
    %s42 = sphi 0, %s26
    %s46 = sphi 0, %s46
    %s48 = sphi 0, %s46
    %s49 = sphi 0, %s48
    %s63 = sphi 0, %s49
    %s67 = sphi 0, %s67
    %s69 = sphi 0, %s67
    %s70 = sphi 0, %s69
    %s84 = sphi 0, %s70
    %s88 = sphi 0, %s88
    %s90 = sphi 0, %s88
    %s91 = sphi 0, %s90
    %s105 = sphi 0, %s91
    %s109 = sphi 0, %s109
    %s111 = sphi 0, %s109
    %s112 = sphi 0, %s111
    %s126 = sphi 0, %s112
    %s130 = sphi 0, %s130
    %s132 = sphi 0, %s130
    %s133 = sphi 0, %s132
    %s147 = sphi 0, %s133
    %s153 = sphi 0, %s155
    %s156 = sphi 0, %s153
    %s157 = sphi 0, %s156
    %s173 = sphi 0, %s157
  $region4: #{tpu_custom_call.1} parent=0 // loop_header_branch
    %15 = sbr.rel (%p13) target = $region8
  $region5: #{tpu_custom_call.1} parent=0 // loop_body
    %s17 = ssub.s32 %s12, 1
    %s18 = ssub.s32 %s12, 2
    %s19 = sadd.s32 %s12, 1
    %s20 = ssub.s32 %s12, %s19
    %p21 = scmp.eq.s32.totalorder %s20, 0
    %s23 = sadd.s32 %s22, 1
    %s24 = scalar_select %p21, %s22, %s23
    %p27 = pneg %p21
    %p28 = scmp.eq.s32.totalorder %s12, 1
    %p29 = por %p27, %p28
    %p30 = scmp.ne.s32.totalorder %s22, %s25
    %p31 = scmp.eq.s32.totalorder %s12, 0
    %p32 = por %p30, %p31
    %p33 = scmp.ne.s32.totalorder %s22, %s25
    %p34 = scmp.eq.s32.totalorder %s17, 1
    %p35 = por %p33, %p34
    %p36 = scmp.ne.s32.totalorder %s25, %s26
    %p37 = scmp.eq.s32.totalorder %s17, 0
    %p38 = por %p36, %p37
    %p39 = scmp.ne.s32.totalorder %s25, %s26
    %p40 = scmp.eq.s32.totalorder %s18, 1
    %p41 = por %p39, %p40
    %p43 = scmp.ne.s32.totalorder %s26, %s42
    %p44 = scmp.eq.s32.totalorder %s18, 0
    %p45 = por %p43, %p44
    %s47 = sadd.s32 %s46, 1
    %p50 = scmp.eq.s32.totalorder %s12, 1
    %p51 = scmp.ne.s32.totalorder %s46, %s48
    %p52 = scmp.eq.s32.totalorder %s12, 0
    %p53 = por %p51, %p52
    %p54 = scmp.ne.s32.totalorder %s46, %s48
    %p55 = scmp.eq.s32.totalorder %s17, 1
    %p56 = por %p54, %p55
    %p57 = scmp.ne.s32.totalorder %s48, %s49
    %p58 = scmp.eq.s32.totalorder %s17, 0
    %p59 = por %p57, %p58
    %p60 = scmp.ne.s32.totalorder %s48, %s49
    %p61 = scmp.eq.s32.totalorder %s18, 1
    %p62 = por %p60, %p61
    %p64 = scmp.ne.s32.totalorder %s49, %s63
    %p65 = scmp.eq.s32.totalorder %s18, 0
    %p66 = por %p64, %p65
    %s68 = sadd.s32 %s67, 1
    %p71 = scmp.eq.s32.totalorder %s12, 1
    %p72 = scmp.ne.s32.totalorder %s67, %s69
    %p73 = scmp.eq.s32.totalorder %s12, 0
    %p74 = por %p72, %p73
    %p75 = scmp.ne.s32.totalorder %s67, %s69
    %p76 = scmp.eq.s32.totalorder %s17, 1
    %p77 = por %p75, %p76
    %p78 = scmp.ne.s32.totalorder %s69, %s70
    %p79 = scmp.eq.s32.totalorder %s17, 0
    %p80 = por %p78, %p79
    %p81 = scmp.ne.s32.totalorder %s69, %s70
    %p82 = scmp.eq.s32.totalorder %s18, 1
    %p83 = por %p81, %p82
    %p85 = scmp.ne.s32.totalorder %s70, %s84
    %p86 = scmp.eq.s32.totalorder %s18, 0
    %p87 = por %p85, %p86
    %s89 = sadd.s32 %s88, 1
    %p92 = scmp.eq.s32.totalorder %s12, 1
    %p93 = scmp.ne.s32.totalorder %s88, %s90
    %p94 = scmp.eq.s32.totalorder %s12, 0
    %p95 = por %p93, %p94
    %p96 = scmp.ne.s32.totalorder %s88, %s90
    %p97 = scmp.eq.s32.totalorder %s17, 1
    %p98 = por %p96, %p97
    %p99 = scmp.ne.s32.totalorder %s90, %s91
    %p100 = scmp.eq.s32.totalorder %s17, 0
    %p101 = por %p99, %p100
    %p102 = scmp.ne.s32.totalorder %s90, %s91
    %p103 = scmp.eq.s32.totalorder %s18, 1
    %p104 = por %p102, %p103
    %p106 = scmp.ne.s32.totalorder %s91, %s105
    %p107 = scmp.eq.s32.totalorder %s18, 0
    %p108 = por %p106, %p107
    %s110 = sadd.s32 %s109, 1
    %p113 = scmp.eq.s32.totalorder %s12, 1
    %p114 = scmp.ne.s32.totalorder %s109, %s111
    %p115 = scmp.eq.s32.totalorder %s12, 0
    %p116 = por %p114, %p115
    %p117 = scmp.ne.s32.totalorder %s109, %s111
    %p118 = scmp.eq.s32.totalorder %s17, 1
    %p119 = por %p117, %p118
    %p120 = scmp.ne.s32.totalorder %s111, %s112
    %p121 = scmp.eq.s32.totalorder %s17, 0
    %p122 = por %p120, %p121
    %p123 = scmp.ne.s32.totalorder %s111, %s112
    %p124 = scmp.eq.s32.totalorder %s18, 1
    %p125 = por %p123, %p124
    %p127 = scmp.ne.s32.totalorder %s112, %s126
    %p128 = scmp.eq.s32.totalorder %s18, 0
    %p129 = por %p127, %p128
    %s131 = sadd.s32 %s130, 1
    %p134 = scmp.eq.s32.totalorder %s12, 1
    %p135 = scmp.ne.s32.totalorder %s130, %s132
    %p136 = scmp.eq.s32.totalorder %s12, 0
    %p137 = por %p135, %p136
    %p138 = scmp.ne.s32.totalorder %s130, %s132
    %p139 = scmp.eq.s32.totalorder %s17, 1
    %p140 = por %p138, %p139
    %p141 = scmp.ne.s32.totalorder %s132, %s133
    %p142 = scmp.eq.s32.totalorder %s17, 0
    %p143 = por %p141, %p142
    %p144 = scmp.ne.s32.totalorder %s132, %s133
    %p145 = scmp.eq.s32.totalorder %s18, 1
    %p146 = por %p144, %p145
    %p148 = scmp.ne.s32.totalorder %s133, %s147
    %p149 = scmp.eq.s32.totalorder %s18, 0
    %p150 = por %p148, %p149
    %s151 = ssub.s32 %s12, %s19
    %p152 = scmp.eq.s32.totalorder %s151, 0
    %s154 = sadd.s32 %s153, 1
    %s155 = scalar_select %p152, %s153, %s154
    %p158 = pneg %p152
    %p159 = scmp.eq.s32.totalorder %s12, 1
    %p160 = por %p158, %p159
    %p161 = scmp.ne.s32.totalorder %s153, %s156
    %p162 = scmp.eq.s32.totalorder %s12, 0
    %p163 = por %p161, %p162
    %p164 = scmp.ne.s32.totalorder %s153, %s156
    %p165 = scmp.eq.s32.totalorder %s17, 1
    %p166 = por %p164, %p165
    %p167 = scmp.ne.s32.totalorder %s156, %s157
    %p168 = scmp.eq.s32.totalorder %s17, 0
    %p169 = por %p167, %p168
    %p170 = scmp.ne.s32.totalorder %s156, %s157
    %p171 = scmp.eq.s32.totalorder %s18, 1
    %p172 = por %p170, %p171
    %p174 = scmp.ne.s32.totalorder %s157, %s173
    %p175 = scmp.eq.s32.totalorder %s18, 0
    %p176 = por %p174, %p175
    %p177 = scmp.le.s32.totalorder 1, %s12
    %p178 = scmp.lt.s32.totalorder %s12, 3
    %p179 = pnand %p177, %p178
    %p180 = pneg %p179
    // Predicated region
    $region9: #{tpu_custom_call.1} parent=5 // pred_check
      _
    $region10: #{tpu_custom_call.1} parent=5 // pred_check_branch
      %182 = sbr.rel (%p179) target = $region12
    $region11: #{tpu_custom_call.1} parent=5 // pred_region
      %s183 = ssub.s32 %s12, 1
      // Predicated region
      $region13: #{tpu_custom_call.1} parent=11 // pred_check
        %p184 = pneg %p59
      $region14: #{tpu_custom_call.1} parent=11 // pred_check_branch
        %186 = sbr.rel (%p184) target = $region16
      $region15: #{tpu_custom_call.1} parent=11 // pred_region
        _
      $region16: #{tpu_custom_call.1} parent=11 // pred_fallthru
        _
      // Predicated region
      $region17: #{tpu_custom_call.1} parent=11 // pred_check
        %p187 = pneg %p80
      $region18: #{tpu_custom_call.1} parent=11 // pred_check_branch
        %189 = sbr.rel (%p187) target = $region20
      $region19: #{tpu_custom_call.1} parent=11 // pred_region
        _
      $region20: #{tpu_custom_call.1} parent=11 // pred_fallthru
        _
      // Predicated region
      $region21: #{tpu_custom_call.1} parent=11 // pred_check
        %p190 = pneg %p101
      $region22: #{tpu_custom_call.1} parent=11 // pred_check_branch
        %192 = sbr.rel (%p190) target = $region24
      $region23: #{tpu_custom_call.1} parent=11 // pred_region
        _
      $region24: #{tpu_custom_call.1} parent=11 // pred_fallthru
        _
      // Predicated region
      $region25: #{tpu_custom_call.1} parent=11 // pred_check
        %p193 = pneg %p122
      $region26: #{tpu_custom_call.1} parent=11 // pred_check_branch
        %195 = sbr.rel (%p193) target = $region28
      $region27: #{tpu_custom_call.1} parent=11 // pred_region
        _
      $region28: #{tpu_custom_call.1} parent=11 // pred_fallthru
        _
      // Predicated region
      $region29: #{tpu_custom_call.1} parent=11 // pred_check
        %p196 = pneg %p143
      $region30: #{tpu_custom_call.1} parent=11 // pred_check_branch
        %198 = sbr.rel (%p196) target = $region32
      $region31: #{tpu_custom_call.1} parent=11 // pred_region
        _
      $region32: #{tpu_custom_call.1} parent=11 // pred_fallthru
        _
    $region12: #{tpu_custom_call.1} parent=5 // pred_fallthru
      _
    %p199 = scmp.lt.s32.totalorder %s12, 2
    // Predicated region
    $region33: #{tpu_custom_call.1} parent=5 // pred_check
      %p200 = pneg %p199
    $region34: #{tpu_custom_call.1} parent=5 // pred_check_branch
      %202 = sbr.rel (%p200) target = $region36
    $region35: #{tpu_custom_call.1} parent=5 // pred_region
      // Predicated region
      $region37: #{tpu_custom_call.1} parent=35 // pred_check
        %p203 = pneg %p32
      $region38: #{tpu_custom_call.1} parent=35 // pred_check_branch
        %205 = sbr.rel (%p203) target = $region40
      $region39: #{tpu_custom_call.1} parent=35 // pred_region
        %s206 = smul.u32 16, %s12
        %p207 = scmp.lt.s32.totalorder %s206, 31
        %s208 = scalar_select %p207, %s206, 31
        %s209 = smul.addr %s208, 8
        %s210 = scalar_lea.vmem %s0, %s209
        %s211 = smul.u32 16, %s12
      $region40: #{tpu_custom_call.1} parent=35 // pred_fallthru
        _
    $region36: #{tpu_custom_call.1} parent=5 // pred_fallthru
      _
    %p212 = scmp.le.s32.totalorder 1, %s12
    %p213 = scmp.lt.s32.totalorder %s12, 3
    %p214 = pnand %p212, %p213
    %p215 = pneg %p214
    // Predicated region
    $region41: #{tpu_custom_call.1} parent=5 // pred_check
      _
    $region42: #{tpu_custom_call.1} parent=5 // pred_check_branch
      %217 = sbr.rel (%p214) target = $region44
    $region43: #{tpu_custom_call.1} parent=5 // pred_region
      %s218 = ssub.s32 %s12, 1
      %s219 = smul.u32 16, %s17
      %p220 = scmp.lt.s32.totalorder %s219, 31
      %s221 = scalar_select %p220, %s219, 31
      %s222 = smul.addr %s221, 8
      %s223 = scalar_lea.vmem %s0, %s222
      %p224 = pneg %p38
      %p225 = pneg %p35
      %p226 = pneg %p59
      %p227 = pneg %p56
      %p228 = pneg %p80
      %p229 = pneg %p77
      %p230 = pneg %p101
      %p231 = pneg %p98
      %p232 = pneg %p122
      %p233 = pneg %p119
      %p234 = pneg %p143
      %p235 = pneg %p140
      %p236 = pneg %p169
      %p237 = pneg %p166
      %s238 = smul.u32 16, %s17
      %p239 = scmp.lt.s32.totalorder %s238, 31
      %s240 = scalar_select %p239, %s238, 31
      %s241 = smul.addr %s240, 8
      %s242 = scalar_lea.vmem %s6, %s241
      %s243 = smul.u32 16, %s17
      %p244 = scmp.lt.s32.totalorder %s243, 31
      %s245 = scalar_select %p244, %s243, 31
      %s246 = smul.addr %s245, 8
      %s247 = scalar_lea.vmem %s0, %s246
      %s248 = smul.u32 16, %s17
      %s249 = smul.u32 16, %s17
      %p250 = scmp.lt.s32.totalorder %s249, 31
      %s251 = scalar_select %p250, %s249, 31
      %s252 = smul.addr %s251, 8
      %s253 = scalar_lea.vmem %s6, %s252
      %s254 = smul.u32 16, %s17
      %v255 = vld [vmem:[%s247] sm:$0xff]
      %v256 = vld [vmem:[%s247 + $0x8] sm:$0xff]
      %v257 = vld [vmem:[%s247 + $0x10] sm:$0xff]
      %v258 = vld [vmem:[%s247 + $0x18] sm:$0xff]
      %v259 = vld [vmem:[%s247 + $0x20] sm:$0xff]
      %v260 = vld [vmem:[%s247 + $0x28] sm:$0xff]
      %v261 = vld [vmem:[%s247 + $0x30] sm:$0xff]
      %v262 = vld [vmem:[%s247 + $0x38] sm:$0xff]
      %v263 = vld [vmem:[%s247 + $0x40] sm:$0xff]
      %v264 = vld [vmem:[%s247 + $0x48] sm:$0xff]
      %v265 = vld [vmem:[%s247 + $0x50] sm:$0xff]
      %v266 = vld [vmem:[%s247 + $0x58] sm:$0xff]
      %v267 = vld [vmem:[%s247 + $0x60] sm:$0xff]
      %v268 = vld [vmem:[%s247 + $0x68] sm:$0xff]
      %v269 = vld [vmem:[%s247 + $0x70] sm:$0xff]
      %v270 = vld [vmem:[%s247 + $0x78] sm:$0xff]
      %v271 = vld [vmem:[%s1] sm:$0xff]
      %v272 = vld [vmem:[%s1 + $0x8] sm:$0xff]
      %v273 = vld [vmem:[%s1 + $0x10] sm:$0xff]
      %v274 = vld [vmem:[%s1 + $0x18] sm:$0xff]
      %v275 = vld [vmem:[%s5] sm:$0x1]
      %v276 = vlaneseq
      %v277 = vshrl.u32 %v276, 7
      %v278 = vsub.s32 0, %v277
      %v279 = vrot.slane %v275, %v278
      %vm280 = vcmask 261120
      %v282 = vsel %vm280, %v255, 0
      %v285 = vsel %vm280, %v256, 0
      %v288 = vsel %vm280, %v257, 0
      %v291 = vsel %vm280, %v258, 0
      %v294 = vsel %vm280, %v259, 0
      %v297 = vsel %vm280, %v260, 0
      %v300 = vsel %vm280, %v261, 0
      %v303 = vsel %vm280, %v262, 0
      %v306 = vsel %vm280, %v263, 0
      %v309 = vsel %vm280, %v264, 0
      %v312 = vsel %vm280, %v265, 0
      %v315 = vsel %vm280, %v266, 0
      %v318 = vsel %vm280, %v267, 0
      %v321 = vsel %vm280, %v268, 0
      %v324 = vsel %vm280, %v269, 0
      %v327 = vsel %vm280, %v270, 0
      %329 = vmatprep.subr.mxu0 0.0
      %330 = vmatpush1.msra.mxu0 %v271
      %331 = vmatprep.subr.mxu0 0.0
      %332 = vmatpush1.msra.mxu0 %v272
      %333 = vmatprep.subr.mxu0 0.0
      %334 = vmatpush1.msra.mxu0 %v273
      %335 = vmatprep.subr.mxu0 0.0
      %336 = vmatpush1.msra.mxu0 %v274
      %337 = vmatprep.subr.mxu0 0.0
      %338 = vmatpush1.msra.mxu0 0.0
      %339 = vmatprep.subr.mxu0 0.0
      %340 = vmatpush1.msra.mxu0 0.0
      %341 = vmatprep.subr.mxu0 0.0
      %342 = vmatpush1.msra.mxu0 0.0
      %343 = vmatprep.subr.mxu0 0.0
      %344 = vmatpush1.msra.mxu0 0.0
      %345 = vmatprep.subr.mxu0 0.0
      %346 = vmatpush1.msra.mxu0 0.0
      %347 = vmatprep.subr.mxu0 0.0
      %348 = vmatpush1.msra.mxu0 0.0
      %349 = vmatprep.subr.mxu0 0.0
      %350 = vmatpush1.msra.mxu0 0.0
      %351 = vmatprep.subr.mxu0 0.0
      %352 = vmatpush1.msra.mxu0 0.0
      %353 = vmatprep.subr.mxu0 0.0
      %354 = vmatpush1.msra.mxu0 0.0
      %355 = vmatprep.subr.mxu0 0.0
      %356 = vmatpush1.msra.mxu0 0.0
      %357 = vmatprep.subr.mxu0 0.0
      %358 = vmatpush1.msra.mxu0 0.0
      %359 = vmatprep.subr.mxu0 0.0
      %360 = vmatpush1.msra.mxu0 0.0
      %361 = vmatprep.subr.mxu0 0.0
      %362 = vmatpush1.msra.mxu0 0.0
      %363 = vmatprep.subr.mxu0 0.0
      %364 = vmatpush1.msra.mxu0 0.0
      %365 = vmatprep.subr.mxu0 0.0
      %366 = vmatpush1.msra.mxu0 0.0
      %367 = vmatprep.subr.mxu0 0.0
      %368 = vmatpush1.msra.mxu0 0.0
      %369 = vmatprep.subr.mxu0 0.0
      %370 = vmatpush1.msra.mxu0 0.0
      %371 = vmatprep.subr.mxu0 0.0
      %372 = vmatpush1.msra.mxu0 0.0
      %373 = vmatprep.subr.mxu0 0.0
      %374 = vmatpush1.msra.mxu0 0.0
      %375 = vmatprep.subr.mxu0 0.0
      %376 = vmatpush1.msra.mxu0 0.0
      %377 = vmatprep.subr.mxu0 0.0
      %378 = vmatpush1.msra.mxu0 0.0
      %379 = vmatprep.subr.mxu0 0.0
      %380 = vmatpush1.msra.mxu0 0.0
      %381 = vmatprep.subr.mxu0 0.0
      %382 = vmatpush1.msra.mxu0 0.0
      %383 = vmatprep.subr.mxu0 0.0
      %384 = vmatpush1.msra.mxu0 0.0
      %385 = vmatprep.subr.mxu0 0.0
      %386 = vmatpush1.msra.mxu0 0.0
      %387 = vmatprep.subr.mxu0 0.0
      %388 = vmatpush1.msra.mxu0 0.0
      %389 = vmatprep.subr.mxu0 0.0
      %390 = vmatpush1.msra.mxu0 0.0
      %391 = vmatprep.subr.mxu0 0.0
      %392 = vmatpush1.msra.mxu0 0.0
      %393 = vmatprep.mubr.f32.mxu0 0.0
      %394 = vmatmul.mubr.f32.gmra.mrb[0].mxu0 %v282
      %v395 = vpop.f32.mrb[0].mxu0
      %v396 = vadd.f32 %v279, %v395
      %v397 = vpop.f32.mrb[0].mxu0
      %398 = vmatprep.mubr.f32.mxu0 0.0
      %399 = vmatmul.mubr.f32.gmra.mrb[0].mxu0 %v285
      %v400 = vpop.f32.mrb[0].mxu0
      %v401 = vadd.f32 %v279, %v400
      %v402 = vpop.f32.mrb[0].mxu0
      %403 = vmatprep.mubr.f32.mxu0 0.0
      %404 = vmatmul.mubr.f32.gmra.mrb[0].mxu0 %v288
      %v405 = vpop.f32.mrb[0].mxu0
      %v406 = vadd.f32 %v279, %v405
      %v407 = vpop.f32.mrb[0].mxu0
      %408 = vmatprep.mubr.f32.mxu0 0.0
      %409 = vmatmul.mubr.f32.gmra.mrb[0].mxu0 %v291
      %v410 = vpop.f32.mrb[0].mxu0
      %v411 = vadd.f32 %v279, %v410
      %v412 = vpop.f32.mrb[0].mxu0
      %413 = vmatprep.mubr.f32.mxu0 0.0
      %414 = vmatmul.mubr.f32.gmra.mrb[0].mxu0 %v294
      %v415 = vpop.f32.mrb[0].mxu0
      %v416 = vadd.f32 %v279, %v415
      %v417 = vpop.f32.mrb[0].mxu0
      %418 = vmatprep.mubr.f32.mxu0 0.0
      %419 = vmatmul.mubr.f32.gmra.mrb[0].mxu0 %v297
      %v420 = vpop.f32.mrb[0].mxu0
      %v421 = vadd.f32 %v279, %v420
      %v422 = vpop.f32.mrb[0].mxu0
      %423 = vmatprep.mubr.f32.mxu0 0.0
      %424 = vmatmul.mubr.f32.gmra.mrb[0].mxu0 %v300
      %v425 = vpop.f32.mrb[0].mxu0
      %v426 = vadd.f32 %v279, %v425
      %v427 = vpop.f32.mrb[0].mxu0
      %428 = vmatprep.mubr.f32.mxu0 0.0
      %429 = vmatmul.mubr.f32.gmra.mrb[0].mxu0 %v303
      %v430 = vpop.f32.mrb[0].mxu0
      %v431 = vadd.f32 %v279, %v430
      %v432 = vpop.f32.mrb[0].mxu0
      %433 = vmatprep.mubr.f32.mxu0 0.0
      %434 = vmatmul.mubr.f32.gmra.mrb[0].mxu0 %v306
      %v435 = vpop.f32.mrb[0].mxu0
      %v436 = vadd.f32 %v279, %v435
      %v437 = vpop.f32.mrb[0].mxu0
      %438 = vmatprep.mubr.f32.mxu0 0.0
      %439 = vmatmul.mubr.f32.gmra.mrb[0].mxu0 %v309
      %v440 = vpop.f32.mrb[0].mxu0
      %v441 = vadd.f32 %v279, %v440
      %v442 = vpop.f32.mrb[0].mxu0
      %443 = vmatprep.mubr.f32.mxu0 0.0
      %444 = vmatmul.mubr.f32.gmra.mrb[0].mxu0 %v312
      %v445 = vpop.f32.mrb[0].mxu0
      %v446 = vadd.f32 %v279, %v445
      %v447 = vpop.f32.mrb[0].mxu0
      %448 = vmatprep.mubr.f32.mxu0 0.0
      %449 = vmatmul.mubr.f32.gmra.mrb[0].mxu0 %v315
      %v450 = vpop.f32.mrb[0].mxu0
      %v451 = vadd.f32 %v279, %v450
      %v452 = vpop.f32.mrb[0].mxu0
      %453 = vmatprep.mubr.f32.mxu0 0.0
      %454 = vmatmul.mubr.f32.gmra.mrb[0].mxu0 %v318
      %v455 = vpop.f32.mrb[0].mxu0
      %v456 = vadd.f32 %v279, %v455
      %v457 = vpop.f32.mrb[0].mxu0
      %458 = vmatprep.mubr.f32.mxu0 0.0
      %459 = vmatmul.mubr.f32.gmra.mrb[0].mxu0 %v321
      %v460 = vpop.f32.mrb[0].mxu0
      %v461 = vadd.f32 %v279, %v460
      %v462 = vpop.f32.mrb[0].mxu0
      %463 = vmatprep.mubr.f32.mxu0 0.0
      %464 = vmatmul.mubr.f32.gmra.mrb[0].mxu0 %v324
      %v465 = vpop.f32.mrb[0].mxu0
      %v466 = vadd.f32 %v279, %v465
      %v467 = vpop.f32.mrb[0].mxu0
      %468 = vmatprep.mubr.f32.mxu0 0.0
      %469 = vmatmul.mubr.f32.gmra.mrb[0].mxu0 %v327
      %v470 = vpop.f32.mrb[0].mxu0
      %v471 = vadd.f32 %v279, %v470
      %v472 = vpop.f32.mrb[0].mxu0
      %473 = vdwg.mxu0
      %v474 = vmax.f32 %v396, 0.0
      %v475 = vmax.f32 %v401, 0.0
      %v476 = vmax.f32 %v406, 0.0
      %v477 = vmax.f32 %v411, 0.0
      %v478 = vmax.f32 %v416, 0.0
      %v479 = vmax.f32 %v421, 0.0
      %v480 = vmax.f32 %v426, 0.0
      %v481 = vmax.f32 %v431, 0.0
      %v482 = vmax.f32 %v436, 0.0
      %v483 = vmax.f32 %v441, 0.0
      %v484 = vmax.f32 %v446, 0.0
      %v485 = vmax.f32 %v451, 0.0
      %v486 = vmax.f32 %v456, 0.0
      %v487 = vmax.f32 %v461, 0.0
      %v488 = vmax.f32 %v466, 0.0
      %v489 = vmax.f32 %v471, 0.0
      %v490 = vld [vmem:[%s2] sm:$0xff]
      %v491 = vld [vmem:[%s2 + $0x8] sm:$0xff]
      %v492 = vld [vmem:[%s2 + $0x10] sm:$0xff]
      %v493 = vld [vmem:[%s2 + $0x18] sm:$0xff]
      %v494 = vld [vmem:[%s5 + $0x1] sm:$0x1]
      %v495 = vlaneseq
      %v496 = vshrl.u32 %v495, 7
      %v497 = vsub.s32 0, %v496
      %v498 = vrot.slane %v494, %v497
      %v500 = vsel %vm280, %v474, 0
      %v503 = vsel %vm280, %v475, 0
      %v506 = vsel %vm280, %v476, 0
      %v509 = vsel %vm280, %v477, 0
      %v512 = vsel %vm280, %v478, 0
      %v515 = vsel %vm280, %v479, 0
      %v518 = vsel %vm280, %v480, 0
      %v521 = vsel %vm280, %v481, 0
      %v524 = vsel %vm280, %v482, 0
      %v527 = vsel %vm280, %v483, 0
      %v530 = vsel %vm280, %v484, 0
      %v533 = vsel %vm280, %v485, 0
      %v536 = vsel %vm280, %v486, 0
      %v539 = vsel %vm280, %v487, 0
      %v542 = vsel %vm280, %v488, 0
      %v545 = vsel %vm280, %v489, 0
      %547 = vmatprep.subr.mxu0 0.0
      %548 = vmatpush1.msra.mxu0 %v490
      %549 = vmatprep.subr.mxu0 0.0
      %550 = vmatpush1.msra.mxu0 %v491
      %551 = vmatprep.subr.mxu0 0.0
      %552 = vmatpush1.msra.mxu0 %v492
      %553 = vmatprep.subr.mxu0 0.0
      %554 = vmatpush1.msra.mxu0 %v493
      %555 = vmatprep.subr.mxu0 0.0
      %556 = vmatpush1.msra.mxu0 0.0
      %557 = vmatprep.subr.mxu0 0.0
      %558 = vmatpush1.msra.mxu0 0.0
      %559 = vmatprep.subr.mxu0 0.0
      %560 = vmatpush1.msra.mxu0 0.0
      %561 = vmatprep.subr.mxu0 0.0
      %562 = vmatpush1.msra.mxu0 0.0
      %563 = vmatprep.subr.mxu0 0.0
      %564 = vmatpush1.msra.mxu0 0.0
      %565 = vmatprep.subr.mxu0 0.0
      %566 = vmatpush1.msra.mxu0 0.0
      %567 = vmatprep.subr.mxu0 0.0
      %568 = vmatpush1.msra.mxu0 0.0
      %569 = vmatprep.subr.mxu0 0.0
      %570 = vmatpush1.msra.mxu0 0.0
      %571 = vmatprep.subr.mxu0 0.0
      %572 = vmatpush1.msra.mxu0 0.0
      %573 = vmatprep.subr.mxu0 0.0
      %574 = vmatpush1.msra.mxu0 0.0
      %575 = vmatprep.subr.mxu0 0.0
      %576 = vmatpush1.msra.mxu0 0.0
      %577 = vmatprep.subr.mxu0 0.0
      %578 = vmatpush1.msra.mxu0 0.0
      %579 = vmatprep.subr.mxu0 0.0
      %580 = vmatpush1.msra.mxu0 0.0
      %581 = vmatprep.subr.mxu0 0.0
      %582 = vmatpush1.msra.mxu0 0.0
      %583 = vmatprep.subr.mxu0 0.0
      %584 = vmatpush1.msra.mxu0 0.0
      %585 = vmatprep.subr.mxu0 0.0
      %586 = vmatpush1.msra.mxu0 0.0
      %587 = vmatprep.subr.mxu0 0.0
      %588 = vmatpush1.msra.mxu0 0.0
      %589 = vmatprep.subr.mxu0 0.0
      %590 = vmatpush1.msra.mxu0 0.0
      %591 = vmatprep.subr.mxu0 0.0
      %592 = vmatpush1.msra.mxu0 0.0
      %593 = vmatprep.subr.mxu0 0.0
      %594 = vmatpush1.msra.mxu0 0.0
      %595 = vmatprep.subr.mxu0 0.0
      %596 = vmatpush1.msra.mxu0 0.0
      %597 = vmatprep.subr.mxu0 0.0
      %598 = vmatpush1.msra.mxu0 0.0
      %599 = vmatprep.subr.mxu0 0.0
      %600 = vmatpush1.msra.mxu0 0.0
      %601 = vmatprep.subr.mxu0 0.0
      %602 = vmatpush1.msra.mxu0 0.0
      %603 = vmatprep.subr.mxu0 0.0
      %604 = vmatpush1.msra.mxu0 0.0
      %605 = vmatprep.subr.mxu0 0.0
      %606 = vmatpush1.msra.mxu0 0.0
      %607 = vmatprep.subr.mxu0 0.0
      %608 = vmatpush1.msra.mxu0 0.0
      %609 = vmatprep.subr.mxu0 0.0
      %610 = vmatpush1.msra.mxu0 0.0
      %611 = vmatprep.mubr.f32.mxu0 0.0
      %612 = vmatmul.mubr.f32.gmra.mrb[0].mxu0 %v500
      %v613 = vpop.f32.mrb[0].mxu0
      %v614 = vadd.f32 %v498, %v613
      %v615 = vpop.f32.mrb[0].mxu0
      %616 = vmatprep.mubr.f32.mxu0 0.0
      %617 = vmatmul.mubr.f32.gmra.mrb[0].mxu0 %v503
      %v618 = vpop.f32.mrb[0].mxu0
      %v619 = vadd.f32 %v498, %v618
      %v620 = vpop.f32.mrb[0].mxu0
      %621 = vmatprep.mubr.f32.mxu0 0.0
      %622 = vmatmul.mubr.f32.gmra.mrb[0].mxu0 %v506
      %v623 = vpop.f32.mrb[0].mxu0
      %v624 = vadd.f32 %v498, %v623
      %v625 = vpop.f32.mrb[0].mxu0
      %626 = vmatprep.mubr.f32.mxu0 0.0
      %627 = vmatmul.mubr.f32.gmra.mrb[0].mxu0 %v509
      %v628 = vpop.f32.mrb[0].mxu0
      %v629 = vadd.f32 %v498, %v628
      %v630 = vpop.f32.mrb[0].mxu0
      %631 = vmatprep.mubr.f32.mxu0 0.0
      %632 = vmatmul.mubr.f32.gmra.mrb[0].mxu0 %v512
      %v633 = vpop.f32.mrb[0].mxu0
      %v634 = vadd.f32 %v498, %v633
      %v635 = vpop.f32.mrb[0].mxu0
      %636 = vmatprep.mubr.f32.mxu0 0.0
      %637 = vmatmul.mubr.f32.gmra.mrb[0].mxu0 %v515
      %v638 = vpop.f32.mrb[0].mxu0
      %v639 = vadd.f32 %v498, %v638
      %v640 = vpop.f32.mrb[0].mxu0
      %641 = vmatprep.mubr.f32.mxu0 0.0
      %642 = vmatmul.mubr.f32.gmra.mrb[0].mxu0 %v518
      %v643 = vpop.f32.mrb[0].mxu0
      %v644 = vadd.f32 %v498, %v643
      %v645 = vpop.f32.mrb[0].mxu0
      %646 = vmatprep.mubr.f32.mxu0 0.0
      %647 = vmatmul.mubr.f32.gmra.mrb[0].mxu0 %v521
      %v648 = vpop.f32.mrb[0].mxu0
      %v649 = vadd.f32 %v498, %v648
      %v650 = vpop.f32.mrb[0].mxu0
      %651 = vmatprep.mubr.f32.mxu0 0.0
      %652 = vmatmul.mubr.f32.gmra.mrb[0].mxu0 %v524
      %v653 = vpop.f32.mrb[0].mxu0
      %v654 = vadd.f32 %v498, %v653
      %v655 = vpop.f32.mrb[0].mxu0
      %656 = vmatprep.mubr.f32.mxu0 0.0
      %657 = vmatmul.mubr.f32.gmra.mrb[0].mxu0 %v527
      %v658 = vpop.f32.mrb[0].mxu0
      %v659 = vadd.f32 %v498, %v658
      %v660 = vpop.f32.mrb[0].mxu0
      %661 = vmatprep.mubr.f32.mxu0 0.0
      %662 = vmatmul.mubr.f32.gmra.mrb[0].mxu0 %v530
      %v663 = vpop.f32.mrb[0].mxu0
      %v664 = vadd.f32 %v498, %v663
      %v665 = vpop.f32.mrb[0].mxu0
      %666 = vmatprep.mubr.f32.mxu0 0.0
      %667 = vmatmul.mubr.f32.gmra.mrb[0].mxu0 %v533
      %v668 = vpop.f32.mrb[0].mxu0
      %v669 = vadd.f32 %v498, %v668
      %v670 = vpop.f32.mrb[0].mxu0
      %671 = vmatprep.mubr.f32.mxu0 0.0
      %672 = vmatmul.mubr.f32.gmra.mrb[0].mxu0 %v536
      %v673 = vpop.f32.mrb[0].mxu0
      %v674 = vadd.f32 %v498, %v673
      %v675 = vpop.f32.mrb[0].mxu0
      %676 = vmatprep.mubr.f32.mxu0 0.0
      %677 = vmatmul.mubr.f32.gmra.mrb[0].mxu0 %v539
      %v678 = vpop.f32.mrb[0].mxu0
      %v679 = vadd.f32 %v498, %v678
      %v680 = vpop.f32.mrb[0].mxu0
      %681 = vmatprep.mubr.f32.mxu0 0.0
      %682 = vmatmul.mubr.f32.gmra.mrb[0].mxu0 %v542
      %v683 = vpop.f32.mrb[0].mxu0
      %v684 = vadd.f32 %v498, %v683
      %v685 = vpop.f32.mrb[0].mxu0
      %686 = vmatprep.mubr.f32.mxu0 0.0
      %687 = vmatmul.mubr.f32.gmra.mrb[0].mxu0 %v545
      %v688 = vpop.f32.mrb[0].mxu0
      %v689 = vadd.f32 %v498, %v688
      %v690 = vpop.f32.mrb[0].mxu0
      %691 = vdwg.mxu0
      %v692 = vmax.f32 %v614, 0.0
      %v693 = vmax.f32 %v619, 0.0
      %v694 = vmax.f32 %v624, 0.0
      %v695 = vmax.f32 %v629, 0.0
      %v696 = vmax.f32 %v634, 0.0
      %v697 = vmax.f32 %v639, 0.0
      %v698 = vmax.f32 %v644, 0.0
      %v699 = vmax.f32 %v649, 0.0
      %v700 = vmax.f32 %v654, 0.0
      %v701 = vmax.f32 %v659, 0.0
      %v702 = vmax.f32 %v664, 0.0
      %v703 = vmax.f32 %v669, 0.0
      %v704 = vmax.f32 %v674, 0.0
      %v705 = vmax.f32 %v679, 0.0
      %v706 = vmax.f32 %v684, 0.0
      %v707 = vmax.f32 %v689, 0.0
      %v708 = vld [vmem:[%s3] sm:$0xff]
      %v709 = vld [vmem:[%s3 + $0x8] sm:$0xff]
      %v710 = vld [vmem:[%s3 + $0x10] sm:$0xff]
      %v711 = vld [vmem:[%s3 + $0x18] sm:$0xff]
      %v712 = vld [vmem:[%s5 + $0x2] sm:$0x1]
      %v713 = vlaneseq
      %v714 = vshrl.u32 %v713, 7
      %v715 = vsub.s32 0, %v714
      %v716 = vrot.slane %v712, %v715
      %v718 = vsel %vm280, %v692, 0
      %v721 = vsel %vm280, %v693, 0
      %v724 = vsel %vm280, %v694, 0
      %v727 = vsel %vm280, %v695, 0
      %v730 = vsel %vm280, %v696, 0
      %v733 = vsel %vm280, %v697, 0
      %v736 = vsel %vm280, %v698, 0
      %v739 = vsel %vm280, %v699, 0
      %v742 = vsel %vm280, %v700, 0
      %v745 = vsel %vm280, %v701, 0
      %v748 = vsel %vm280, %v702, 0
      %v751 = vsel %vm280, %v703, 0
      %v754 = vsel %vm280, %v704, 0
      %v757 = vsel %vm280, %v705, 0
      %v760 = vsel %vm280, %v706, 0
      %v763 = vsel %vm280, %v707, 0
      %765 = vmatprep.subr.mxu0 0.0
      %766 = vmatpush1.msra.mxu0 %v708
      %767 = vmatprep.subr.mxu0 0.0
      %768 = vmatpush1.msra.mxu0 %v709
      %769 = vmatprep.subr.mxu0 0.0
      %770 = vmatpush1.msra.mxu0 %v710
      %771 = vmatprep.subr.mxu0 0.0
      %772 = vmatpush1.msra.mxu0 %v711
      %773 = vmatprep.subr.mxu0 0.0
      %774 = vmatpush1.msra.mxu0 0.0
      %775 = vmatprep.subr.mxu0 0.0
      %776 = vmatpush1.msra.mxu0 0.0
      %777 = vmatprep.subr.mxu0 0.0
      %778 = vmatpush1.msra.mxu0 0.0
      %779 = vmatprep.subr.mxu0 0.0
      %780 = vmatpush1.msra.mxu0 0.0
      %781 = vmatprep.subr.mxu0 0.0
      %782 = vmatpush1.msra.mxu0 0.0
      %783 = vmatprep.subr.mxu0 0.0
      %784 = vmatpush1.msra.mxu0 0.0
      %785 = vmatprep.subr.mxu0 0.0
      %786 = vmatpush1.msra.mxu0 0.0
      %787 = vmatprep.subr.mxu0 0.0
      %788 = vmatpush1.msra.mxu0 0.0
      %789 = vmatprep.subr.mxu0 0.0
      %790 = vmatpush1.msra.mxu0 0.0
      %791 = vmatprep.subr.mxu0 0.0
      %792 = vmatpush1.msra.mxu0 0.0
      %793 = vmatprep.subr.mxu0 0.0
      %794 = vmatpush1.msra.mxu0 0.0
      %795 = vmatprep.subr.mxu0 0.0
      %796 = vmatpush1.msra.mxu0 0.0
      %797 = vmatprep.subr.mxu0 0.0
      %798 = vmatpush1.msra.mxu0 0.0
      %799 = vmatprep.subr.mxu0 0.0
      %800 = vmatpush1.msra.mxu0 0.0
      %801 = vmatprep.subr.mxu0 0.0
      %802 = vmatpush1.msra.mxu0 0.0
      %803 = vmatprep.subr.mxu0 0.0
      %804 = vmatpush1.msra.mxu0 0.0
      %805 = vmatprep.subr.mxu0 0.0
      %806 = vmatpush1.msra.mxu0 0.0
      %807 = vmatprep.subr.mxu0 0.0
      %808 = vmatpush1.msra.mxu0 0.0
      %809 = vmatprep.subr.mxu0 0.0
      %810 = vmatpush1.msra.mxu0 0.0
      %811 = vmatprep.subr.mxu0 0.0
      %812 = vmatpush1.msra.mxu0 0.0
      %813 = vmatprep.subr.mxu0 0.0
      %814 = vmatpush1.msra.mxu0 0.0
      %815 = vmatprep.subr.mxu0 0.0
      %816 = vmatpush1.msra.mxu0 0.0
      %817 = vmatprep.subr.mxu0 0.0
      %818 = vmatpush1.msra.mxu0 0.0
      %819 = vmatprep.subr.mxu0 0.0
      %820 = vmatpush1.msra.mxu0 0.0
      %821 = vmatprep.subr.mxu0 0.0
      %822 = vmatpush1.msra.mxu0 0.0
      %823 = vmatprep.subr.mxu0 0.0
      %824 = vmatpush1.msra.mxu0 0.0
      %825 = vmatprep.subr.mxu0 0.0
      %826 = vmatpush1.msra.mxu0 0.0
      %827 = vmatprep.subr.mxu0 0.0
      %828 = vmatpush1.msra.mxu0 0.0
      %829 = vmatprep.mubr.f32.mxu0 0.0
      %830 = vmatmul.mubr.f32.gmra.mrb[0].mxu0 %v718
      %v831 = vpop.f32.mrb[0].mxu0
      %v832 = vadd.f32 %v716, %v831
      %v833 = vpop.f32.mrb[0].mxu0
      %834 = vmatprep.mubr.f32.mxu0 0.0
      %835 = vmatmul.mubr.f32.gmra.mrb[0].mxu0 %v721
      %v836 = vpop.f32.mrb[0].mxu0
      %v837 = vadd.f32 %v716, %v836
      %v838 = vpop.f32.mrb[0].mxu0
      %839 = vmatprep.mubr.f32.mxu0 0.0
      %840 = vmatmul.mubr.f32.gmra.mrb[0].mxu0 %v724
      %v841 = vpop.f32.mrb[0].mxu0
      %v842 = vadd.f32 %v716, %v841
      %v843 = vpop.f32.mrb[0].mxu0
      %844 = vmatprep.mubr.f32.mxu0 0.0
      %845 = vmatmul.mubr.f32.gmra.mrb[0].mxu0 %v727
      %v846 = vpop.f32.mrb[0].mxu0
      %v847 = vadd.f32 %v716, %v846
      %v848 = vpop.f32.mrb[0].mxu0
      %849 = vmatprep.mubr.f32.mxu0 0.0
      %850 = vmatmul.mubr.f32.gmra.mrb[0].mxu0 %v730
      %v851 = vpop.f32.mrb[0].mxu0
      %v852 = vadd.f32 %v716, %v851
      %v853 = vpop.f32.mrb[0].mxu0
      %854 = vmatprep.mubr.f32.mxu0 0.0
      %855 = vmatmul.mubr.f32.gmra.mrb[0].mxu0 %v733
      %v856 = vpop.f32.mrb[0].mxu0
      %v857 = vadd.f32 %v716, %v856
      %v858 = vpop.f32.mrb[0].mxu0
      %859 = vmatprep.mubr.f32.mxu0 0.0
      %860 = vmatmul.mubr.f32.gmra.mrb[0].mxu0 %v736
      %v861 = vpop.f32.mrb[0].mxu0
      %v862 = vadd.f32 %v716, %v861
      %v863 = vpop.f32.mrb[0].mxu0
      %864 = vmatprep.mubr.f32.mxu0 0.0
      %865 = vmatmul.mubr.f32.gmra.mrb[0].mxu0 %v739
      %v866 = vpop.f32.mrb[0].mxu0
      %v867 = vadd.f32 %v716, %v866
      %v868 = vpop.f32.mrb[0].mxu0
      %869 = vmatprep.mubr.f32.mxu0 0.0
      %870 = vmatmul.mubr.f32.gmra.mrb[0].mxu0 %v742
      %v871 = vpop.f32.mrb[0].mxu0
      %v872 = vadd.f32 %v716, %v871
      %v873 = vpop.f32.mrb[0].mxu0
      %874 = vmatprep.mubr.f32.mxu0 0.0
      %875 = vmatmul.mubr.f32.gmra.mrb[0].mxu0 %v745
      %v876 = vpop.f32.mrb[0].mxu0
      %v877 = vadd.f32 %v716, %v876
      %v878 = vpop.f32.mrb[0].mxu0
      %879 = vmatprep.mubr.f32.mxu0 0.0
      %880 = vmatmul.mubr.f32.gmra.mrb[0].mxu0 %v748
      %v881 = vpop.f32.mrb[0].mxu0
      %v882 = vadd.f32 %v716, %v881
      %v883 = vpop.f32.mrb[0].mxu0
      %884 = vmatprep.mubr.f32.mxu0 0.0
      %885 = vmatmul.mubr.f32.gmra.mrb[0].mxu0 %v751
      %v886 = vpop.f32.mrb[0].mxu0
      %v887 = vadd.f32 %v716, %v886
      %v888 = vpop.f32.mrb[0].mxu0
      %889 = vmatprep.mubr.f32.mxu0 0.0
      %890 = vmatmul.mubr.f32.gmra.mrb[0].mxu0 %v754
      %v891 = vpop.f32.mrb[0].mxu0
      %v892 = vadd.f32 %v716, %v891
      %v893 = vpop.f32.mrb[0].mxu0
      %894 = vmatprep.mubr.f32.mxu0 0.0
      %895 = vmatmul.mubr.f32.gmra.mrb[0].mxu0 %v757
      %v896 = vpop.f32.mrb[0].mxu0
      %v897 = vadd.f32 %v716, %v896
      %v898 = vpop.f32.mrb[0].mxu0
      %899 = vmatprep.mubr.f32.mxu0 0.0
      %900 = vmatmul.mubr.f32.gmra.mrb[0].mxu0 %v760
      %v901 = vpop.f32.mrb[0].mxu0
      %v902 = vadd.f32 %v716, %v901
      %v903 = vpop.f32.mrb[0].mxu0
      %904 = vmatprep.mubr.f32.mxu0 0.0
      %905 = vmatmul.mubr.f32.gmra.mrb[0].mxu0 %v763
      %v906 = vpop.f32.mrb[0].mxu0
      %v907 = vadd.f32 %v716, %v906
      %v908 = vpop.f32.mrb[0].mxu0
      %909 = vdwg.mxu0
      %v910 = vmax.f32 %v832, 0.0
      %v911 = vmax.f32 %v837, 0.0
      %v912 = vmax.f32 %v842, 0.0
      %v913 = vmax.f32 %v847, 0.0
      %v914 = vmax.f32 %v852, 0.0
      %v915 = vmax.f32 %v857, 0.0
      %v916 = vmax.f32 %v862, 0.0
      %v917 = vmax.f32 %v867, 0.0
      %v918 = vmax.f32 %v872, 0.0
      %v919 = vmax.f32 %v877, 0.0
      %v920 = vmax.f32 %v882, 0.0
      %v921 = vmax.f32 %v887, 0.0
      %v922 = vmax.f32 %v892, 0.0
      %v923 = vmax.f32 %v897, 0.0
      %v924 = vmax.f32 %v902, 0.0
      %v925 = vmax.f32 %v907, 0.0
      %v926 = vld [vmem:[%s4] sm:$0xff]
      %v927 = vld [vmem:[%s4 + $0x8] sm:$0xff]
      %v928 = vld [vmem:[%s4 + $0x10] sm:$0xff]
      %v929 = vld [vmem:[%s4 + $0x18] sm:$0xff]
      %v930 = vld [vmem:[%s5 + $0x3] sm:$0x1]
      %v931 = vlaneseq
      %v932 = vshrl.u32 %v931, 7
      %v933 = vsub.s32 0, %v932
      %v934 = vrot.slane %v930, %v933
      %v936 = vsel %vm280, %v910, 0
      %v939 = vsel %vm280, %v911, 0
      %v942 = vsel %vm280, %v912, 0
      %v945 = vsel %vm280, %v913, 0
      %v948 = vsel %vm280, %v914, 0
      %v951 = vsel %vm280, %v915, 0
      %v954 = vsel %vm280, %v916, 0
      %v957 = vsel %vm280, %v917, 0
      %v960 = vsel %vm280, %v918, 0
      %v963 = vsel %vm280, %v919, 0
      %v966 = vsel %vm280, %v920, 0
      %v969 = vsel %vm280, %v921, 0
      %v972 = vsel %vm280, %v922, 0
      %v975 = vsel %vm280, %v923, 0
      %v978 = vsel %vm280, %v924, 0
      %v981 = vsel %vm280, %v925, 0
      %983 = vmatprep.subr.mxu0 0.0
      %984 = vmatpush1.msra.mxu0 %v926
      %985 = vmatprep.subr.mxu0 0.0
      %986 = vmatpush1.msra.mxu0 %v927
      %987 = vmatprep.subr.mxu0 0.0
      %988 = vmatpush1.msra.mxu0 %v928
      %989 = vmatprep.subr.mxu0 0.0
      %990 = vmatpush1.msra.mxu0 %v929
      %991 = vmatprep.subr.mxu0 0.0
      %992 = vmatpush1.msra.mxu0 0.0
      %993 = vmatprep.subr.mxu0 0.0
      %994 = vmatpush1.msra.mxu0 0.0
      %995 = vmatprep.subr.mxu0 0.0
      %996 = vmatpush1.msra.mxu0 0.0
      %997 = vmatprep.subr.mxu0 0.0
      %998 = vmatpush1.msra.mxu0 0.0
      %999 = vmatprep.subr.mxu0 0.0
      %1000 = vmatpush1.msra.mxu0 0.0
      %1001 = vmatprep.subr.mxu0 0.0
      %1002 = vmatpush1.msra.mxu0 0.0
      %1003 = vmatprep.subr.mxu0 0.0
      %1004 = vmatpush1.msra.mxu0 0.0
      %1005 = vmatprep.subr.mxu0 0.0
      %1006 = vmatpush1.msra.mxu0 0.0
      %1007 = vmatprep.subr.mxu0 0.0
      %1008 = vmatpush1.msra.mxu0 0.0
      %1009 = vmatprep.subr.mxu0 0.0
      %1010 = vmatpush1.msra.mxu0 0.0
      %1011 = vmatprep.subr.mxu0 0.0
      %1012 = vmatpush1.msra.mxu0 0.0
      %1013 = vmatprep.subr.mxu0 0.0
      %1014 = vmatpush1.msra.mxu0 0.0
      %1015 = vmatprep.subr.mxu0 0.0
      %1016 = vmatpush1.msra.mxu0 0.0
      %1017 = vmatprep.subr.mxu0 0.0
      %1018 = vmatpush1.msra.mxu0 0.0
      %1019 = vmatprep.subr.mxu0 0.0
      %1020 = vmatpush1.msra.mxu0 0.0
      %1021 = vmatprep.subr.mxu0 0.0
      %1022 = vmatpush1.msra.mxu0 0.0
      %1023 = vmatprep.subr.mxu0 0.0
      %1024 = vmatpush1.msra.mxu0 0.0
      %1025 = vmatprep.subr.mxu0 0.0
      %1026 = vmatpush1.msra.mxu0 0.0
      %1027 = vmatprep.subr.mxu0 0.0
      %1028 = vmatpush1.msra.mxu0 0.0
      %1029 = vmatprep.subr.mxu0 0.0
      %1030 = vmatpush1.msra.mxu0 0.0
      %1031 = vmatprep.subr.mxu0 0.0
      %1032 = vmatpush1.msra.mxu0 0.0
      %1033 = vmatprep.subr.mxu0 0.0
      %1034 = vmatpush1.msra.mxu0 0.0
      %1035 = vmatprep.subr.mxu0 0.0
      %1036 = vmatpush1.msra.mxu0 0.0
      %1037 = vmatprep.subr.mxu0 0.0
      %1038 = vmatpush1.msra.mxu0 0.0
      %1039 = vmatprep.subr.mxu0 0.0
      %1040 = vmatpush1.msra.mxu0 0.0
      %1041 = vmatprep.subr.mxu0 0.0
      %1042 = vmatpush1.msra.mxu0 0.0
      %1043 = vmatprep.subr.mxu0 0.0
      %1044 = vmatpush1.msra.mxu0 0.0
      %1045 = vmatprep.subr.mxu0 0.0
      %1046 = vmatpush1.msra.mxu0 0.0
      %1047 = vmatprep.mubr.f32.mxu0 0.0
      %1048 = vmatmul.mubr.f32.gmra.mrb[0].mxu0 %v936
      %v1049 = vpop.f32.mrb[0].mxu0
      %v1050 = vadd.f32 %v934, %v1049
      %v1051 = vpop.f32.mrb[0].mxu0
      %1052 = vmatprep.mubr.f32.mxu0 0.0
      %1053 = vmatmul.mubr.f32.gmra.mrb[0].mxu0 %v939
      %v1054 = vpop.f32.mrb[0].mxu0
      %v1055 = vadd.f32 %v934, %v1054
      %v1056 = vpop.f32.mrb[0].mxu0
      %1057 = vmatprep.mubr.f32.mxu0 0.0
      %1058 = vmatmul.mubr.f32.gmra.mrb[0].mxu0 %v942
      %v1059 = vpop.f32.mrb[0].mxu0
      %v1060 = vadd.f32 %v934, %v1059
      %v1061 = vpop.f32.mrb[0].mxu0
      %1062 = vmatprep.mubr.f32.mxu0 0.0
      %1063 = vmatmul.mubr.f32.gmra.mrb[0].mxu0 %v945
      %v1064 = vpop.f32.mrb[0].mxu0
      %v1065 = vadd.f32 %v934, %v1064
      %v1066 = vpop.f32.mrb[0].mxu0
      %1067 = vmatprep.mubr.f32.mxu0 0.0
      %1068 = vmatmul.mubr.f32.gmra.mrb[0].mxu0 %v948
      %v1069 = vpop.f32.mrb[0].mxu0
      %v1070 = vadd.f32 %v934, %v1069
      %v1071 = vpop.f32.mrb[0].mxu0
      %1072 = vmatprep.mubr.f32.mxu0 0.0
      %1073 = vmatmul.mubr.f32.gmra.mrb[0].mxu0 %v951
      %v1074 = vpop.f32.mrb[0].mxu0
      %v1075 = vadd.f32 %v934, %v1074
      %v1076 = vpop.f32.mrb[0].mxu0
      %1077 = vmatprep.mubr.f32.mxu0 0.0
      %1078 = vmatmul.mubr.f32.gmra.mrb[0].mxu0 %v954
      %v1079 = vpop.f32.mrb[0].mxu0
      %v1080 = vadd.f32 %v934, %v1079
      %v1081 = vpop.f32.mrb[0].mxu0
      %1082 = vmatprep.mubr.f32.mxu0 0.0
      %1083 = vmatmul.mubr.f32.gmra.mrb[0].mxu0 %v957
      %v1084 = vpop.f32.mrb[0].mxu0
      %v1085 = vadd.f32 %v934, %v1084
      %v1086 = vpop.f32.mrb[0].mxu0
      %1087 = vmatprep.mubr.f32.mxu0 0.0
      %1088 = vmatmul.mubr.f32.gmra.mrb[0].mxu0 %v960
      %v1089 = vpop.f32.mrb[0].mxu0
      %v1090 = vadd.f32 %v934, %v1089
      %v1091 = vpop.f32.mrb[0].mxu0
      %1092 = vmatprep.mubr.f32.mxu0 0.0
      %1093 = vmatmul.mubr.f32.gmra.mrb[0].mxu0 %v963
      %v1094 = vpop.f32.mrb[0].mxu0
      %v1095 = vadd.f32 %v934, %v1094
      %v1096 = vpop.f32.mrb[0].mxu0
      %1097 = vmatprep.mubr.f32.mxu0 0.0
      %1098 = vmatmul.mubr.f32.gmra.mrb[0].mxu0 %v966
      %v1099 = vpop.f32.mrb[0].mxu0
      %v1100 = vadd.f32 %v934, %v1099
      %v1101 = vpop.f32.mrb[0].mxu0
      %1102 = vmatprep.mubr.f32.mxu0 0.0
      %1103 = vmatmul.mubr.f32.gmra.mrb[0].mxu0 %v969
      %v1104 = vpop.f32.mrb[0].mxu0
      %v1105 = vadd.f32 %v934, %v1104
      %v1106 = vpop.f32.mrb[0].mxu0
      %1107 = vmatprep.mubr.f32.mxu0 0.0
      %1108 = vmatmul.mubr.f32.gmra.mrb[0].mxu0 %v972
      %v1109 = vpop.f32.mrb[0].mxu0
      %v1110 = vadd.f32 %v934, %v1109
      %v1111 = vpop.f32.mrb[0].mxu0
      %1112 = vmatprep.mubr.f32.mxu0 0.0
      %1113 = vmatmul.mubr.f32.gmra.mrb[0].mxu0 %v975
      %v1114 = vpop.f32.mrb[0].mxu0
      %v1115 = vadd.f32 %v934, %v1114
      %v1116 = vpop.f32.mrb[0].mxu0
      %1117 = vmatprep.mubr.f32.mxu0 0.0
      %1118 = vmatmul.mubr.f32.gmra.mrb[0].mxu0 %v978
      %v1119 = vpop.f32.mrb[0].mxu0
      %v1120 = vadd.f32 %v934, %v1119
      %v1121 = vpop.f32.mrb[0].mxu0
      %1122 = vmatprep.mubr.f32.mxu0 0.0
      %1123 = vmatmul.mubr.f32.gmra.mrb[0].mxu0 %v981
      %v1124 = vpop.f32.mrb[0].mxu0
      %v1125 = vadd.f32 %v934, %v1124
      %v1126 = vpop.f32.mrb[0].mxu0
      %1127 = vdwg.mxu0
      %vm1128 = vcmask 64512
      %1129 = vst.msk [vmem:[%s253] sm:$0xff] %vm1128, %v1050
      %1130 = vst.msk [vmem:[%s253 + $0x8] sm:$0xff] %vm1128, %v1055
      %1131 = vst.msk [vmem:[%s253 + $0x10] sm:$0xff] %vm1128, %v1060
      %1132 = vst.msk [vmem:[%s253 + $0x18] sm:$0xff] %vm1128, %v1065
      %1133 = vst.msk [vmem:[%s253 + $0x20] sm:$0xff] %vm1128, %v1070
      %1134 = vst.msk [vmem:[%s253 + $0x28] sm:$0xff] %vm1128, %v1075
      %1135 = vst.msk [vmem:[%s253 + $0x30] sm:$0xff] %vm1128, %v1080
      %1136 = vst.msk [vmem:[%s253 + $0x38] sm:$0xff] %vm1128, %v1085
      %1137 = vst.msk [vmem:[%s253 + $0x40] sm:$0xff] %vm1128, %v1090
      %1138 = vst.msk [vmem:[%s253 + $0x48] sm:$0xff] %vm1128, %v1095
      %1139 = vst.msk [vmem:[%s253 + $0x50] sm:$0xff] %vm1128, %v1100
      %1140 = vst.msk [vmem:[%s253 + $0x58] sm:$0xff] %vm1128, %v1105
      %1141 = vst.msk [vmem:[%s253 + $0x60] sm:$0xff] %vm1128, %v1110
      %1142 = vst.msk [vmem:[%s253 + $0x68] sm:$0xff] %vm1128, %v1115
      %1143 = vst.msk [vmem:[%s253 + $0x70] sm:$0xff] %vm1128, %v1120
      %1144 = vst.msk [vmem:[%s253 + $0x78] sm:$0xff] %vm1128, %v1125
      %s1145 = smul.u32 16, %s17
      %p1146 = scmp.lt.s32.totalorder %s1145, 31
      %s1147 = scalar_select %p1146, %s1145, 31
      %s1148 = smul.addr %s1147, 8
      %s1149 = scalar_lea.vmem %s6, %s1148
      // Predicated region
      $region45: #{tpu_custom_call.1} parent=43 // pred_check
        %p1150 = pneg %p166
      $region46: #{tpu_custom_call.1} parent=43 // pred_check_branch
        %1152 = sbr.rel (%p1150) target = $region48
      $region47: #{tpu_custom_call.1} parent=43 // pred_region
        %s1153 = smul.u32 16, %s17
      $region48: #{tpu_custom_call.1} parent=43 // pred_fallthru
        _
    $region44: #{tpu_custom_call.1} parent=5 // pred_fallthru
      _
    %p1154 = scmp.le.s32.totalorder 2, %s12
    // Predicated region
    $region49: #{tpu_custom_call.1} parent=5 // pred_check
      %p1155 = pneg %p1154
    $region50: #{tpu_custom_call.1} parent=5 // pred_check_branch
      %1157 = sbr.rel (%p1155) target = $region52
    $region51: #{tpu_custom_call.1} parent=5 // pred_region
      %s1158 = ssub.s32 %s12, 2
      // Predicated region
      $region53: #{tpu_custom_call.1} parent=51 // pred_check
        %p1159 = pneg %p172
      $region54: #{tpu_custom_call.1} parent=51 // pred_check_branch
        %1161 = sbr.rel (%p1159) target = $region56
      $region55: #{tpu_custom_call.1} parent=51 // pred_region
        %s1162 = smul.u32 16, %s18
        %p1163 = scmp.lt.s32.totalorder %s1162, 31
        %s1164 = scalar_select %p1163, %s1162, 31
        %s1165 = smul.addr %s1164, 8
        %s1166 = scalar_lea.vmem %s6, %s1165
      $region56: #{tpu_custom_call.1} parent=51 // pred_fallthru
        _
    $region52: #{tpu_custom_call.1} parent=5 // pred_fallthru
      _
  $region6: #{tpu_custom_call.1} parent=0 // loop_footer
    %s16 = sadd.s32 1, %s12
  $region7: #{tpu_custom_call.1} parent=0 // loop_footer_branch
    %11 = sbr.rel target = $region3
  $region8: #{tpu_custom_call.1} parent=0 // loop_exit
    _

</llo_original>
